<compile_context>
chip_gen: v7x
topology: tpu7x:2x2x1
jax: 0.10.0
libtpu: 0.0.40
codegen_flags: <defaults>
</compile_context>

<pallas_src>
import functools

import jax
import jax.numpy as jnp
from jax.experimental import pallas as pl
from jax.experimental.pallas import tpu as pltpu

LANES = 128
SUBLANES = 8
ROW_QUANTUM = SUBLANES * LANES          # 1024 rows per (8,128) vreg of batch
IN, H1, H2, OUT = 4, 5, 5, 3

# offsets into the flattened parameter vector (weights stored (in, out) row-major)
_W1_OFF = 0
_B1_OFF = _W1_OFF + IN * H1             # 20
_W2_OFF = _B1_OFF + H1                  # 25
_B2_OFF = _W2_OFF + H1 * H2             # 50
_W3_OFF = _B2_OFF + H2                  # 55
_B3_OFF = _W3_OFF + H2 * OUT            # 70
_P_LEN = _B3_OFF + OUT                  # 73


def _cdiv(a, b):
    return (a + b - 1) // b


def _round_up(a, m):
    return _cdiv(a, m) * m


def pack_params(params):
    """Flatten the six Linear params into one (73,) f32 vector for SMEM."""
    w1, b1, w2, b2, w3, b3 = params
    return jnp.concatenate(
        [w1.reshape(-1), b1, w2.reshape(-1), b2, w3.reshape(-1), b3]
    ).astype(jnp.float32)


def _linear_rows(p_ref, rows, k_in, n_out, w_off, b_off, relu):
    """rows: list of k_in (8, TBL) activation slabs (batch on lanes+sublanes).

    Returns n_out slabs: out_n = sum_k W[k, n] * rows[k] + b[n], all weights read
    as scalars from SMEM (free scalar operands, no broadcasts).
    """
    outs = []
    for n in range(n_out):
        acc = rows[0] * p_ref[w_off + n]                       # k = 0
        for k in range(1, k_in):
            acc = acc + rows[k] * p_ref[w_off + k * n_out + n]
        acc = acc + p_ref[b_off + n]
        if relu:
            acc = jnp.maximum(acc, 0.0)
        outs.append(acc)
    return outs


def mlp_kernel(p_ref, x_ref, o_ref):
    # p_ref: (73,) f32 in SMEM            (scalar weights/biases)
    # x_ref: (4, 8, TBL) f32 in VMEM       (feature, sublane-group, lanes)
    # o_ref: (3, 8, TBL) f32 in VMEM
    x_rows = [x_ref[k] for k in range(IN)]                     # 4 x (8, TBL)

    h1 = _linear_rows(p_ref, x_rows, IN, H1, _W1_OFF, _B1_OFF, relu=True)
    h2 = _linear_rows(p_ref, h1, H1, H2, _W2_OFF, _B2_OFF, relu=True)
    y = _linear_rows(p_ref, h2, H2, OUT, _W3_OFF, _B3_OFF, relu=False)

    for n in range(OUT):
        o_ref[n] = y[n]                                        # full-lane stores


def _choose_tiling(B, tb):
    """Pick (#grid steps, rows per tile).  Rows/tile is a multiple of 1024 so the
    batch folds exactly onto (8 sublanes x 128 lanes); the batch is split evenly
    across steps, and batches >1024 rows always get >=2 steps (v7x megacore)."""
    g = max(1, _cdiv(B, tb))
    if g == 1 and B > ROW_QUANTUM:
        g = 2
    tile_rows = _round_up(_cdiv(B, g), ROW_QUANTUM)
    return g, tile_rows


@functools.partial(jax.jit, static_argnames=("tb",))
def mymodel_forward(x, packed_params, *, tb=8192):
    """x: (B, 4) float32 -> (B, 3) float32."""
    B = x.shape[0]
    g, tile_rows = _choose_tiling(B, tb)
    B_pad = g * tile_rows
    TBL = tile_rows // SUBLANES                    # lanes per tile (multiple of 128)
    BP8 = B_pad // SUBLANES

    # (B,4) -> (4,B) -> pad batch -> (4, 8, B_pad/8); the reshape is a free
    # row-major view, so each (r, j) column is batch element r*(B_pad/8)+j.
    x_t = x.astype(jnp.float32).T
    if B_pad != B:
        x_t = jnp.pad(x_t, ((0, 0), (0, B_pad - B)))
    x_3d = x_t.reshape(IN, SUBLANES, BP8)

    out_3d = pl.pallas_call(
        mlp_kernel,
        out_shape=jax.ShapeDtypeStruct((OUT, SUBLANES, BP8), jnp.float32),
        grid=(g,),
        in_specs=[
            pl.BlockSpec(memory_space=pltpu.MemorySpace.SMEM),      # scalar params
            pl.BlockSpec((IN, SUBLANES, TBL), lambda i: (0, 0, i)),  # x tiles
        ],
        out_specs=pl.BlockSpec((OUT, SUBLANES, TBL), lambda i: (0, 0, i)),
        compiler_params=pltpu.CompilerParams(
            dimension_semantics=("parallel",),      # megacore sharding on v7x
            vmem_limit_bytes=32 * 1024 * 1024,      # tiles are ~KBs; safe on v7x
        ),
        cost_estimate=pl.CostEstimate(
            flops=2 * B_pad * (IN * H1 + H1 * H2 + H2 * OUT),
            transcendentals=0,
            bytes_accessed=4 * (B_pad * IN + B_pad * OUT + _P_LEN),
        ),
    )(packed_params, x_3d)

    # (3, 8, B_pad/8) -> (3, B_pad) (free view) -> slice real rows -> (B, 3)
    return out_3d.reshape(OUT, B_pad)[:, :B].T


def init_params(key):
    """Deterministic init matching torch nn.Linear shapes, stored transposed (in,out)."""
    ks = jax.random.split(key, 6)

    def linear(kw, kb, fan_in, fan_out):
        bound = 1.0 / jnp.sqrt(fan_in)
        w = jax.random.uniform(kw, (fan_in, fan_out), jnp.float32, -bound, bound)
        b = jax.random.uniform(kb, (fan_out,), jnp.float32, -bound, bound)
        return w, b

    w1, b1 = linear(ks[0], ks[1], IN, H1)
    w2, b2 = linear(ks[2], ks[3], H1, H2)
    w3, b3 = linear(ks[4], ks[5], H2, OUT)
    return (w1, b1, w2, b2, w3, b3)


def ref_forward(x, params):
    w1, b1, w2, b2, w3, b3 = params
    h = jnp.maximum(x @ w1 + b1, 0.0)
    h = jnp.maximum(h @ w2 + b2, 0.0)
    return h @ w3 + b3


if __name__ == "__main__":
    key = jax.random.PRNGKey(0)
    pkey, xkey = jax.random.split(key)
    params = init_params(pkey)
    packed = pack_params(params)

    # small shape implied by nn.Linear(4, 5): batch=8, in_features=4
    x_small = jax.random.normal(xkey, (8, IN), dtype=jnp.float32)
    out_small = jax.block_until_ready(mymodel_forward(x_small, packed))
    assert out_small.shape == (8, OUT)
    assert jnp.allclose(out_small, ref_forward(x_small, params), atol=1e-5, rtol=1e-5)

    # larger batch exercising batch padding inside a single tile
    x_big = jax.random.normal(jax.random.PRNGKey(1), (700, IN), dtype=jnp.float32)
    out_big = jax.block_until_ready(mymodel_forward(x_big, packed))
    assert out_big.shape == (700, OUT)
    assert jnp.allclose(out_big, ref_forward(x_big, params), atol=1e-5, rtol=1e-5)

    # medium batch exercising the multi-step (>=2 grid steps / megacore) path
    x_med = jax.random.normal(jax.random.PRNGKey(2), (3000, IN), dtype=jnp.float32)
    out_med = jax.block_until_ready(mymodel_forward(x_med, packed))
    assert out_med.shape == (3000, OUT)
    assert jnp.allclose(out_med, ref_forward(x_med, params), atol=1e-5, rtol=1e-5)

    print("KERNEL_OK")
</pallas_src>

<mosaic_0001>
module attributes {stable_mosaic.version = 11 : i64} {
  func.func @mlp_kernel(%arg0: i32, %arg1: memref<73xf32, #tpu.memory_space<smem>>, %arg2: memref<4x8x128xf32, #tpu.memory_space<vmem>>, %arg3: memref<3x8x128xf32, #tpu.memory_space<vmem>>) attributes {dimension_semantics = [#tpu.dimension_semantics<parallel>], iteration_bounds = array<i64: 1>, scalar_prefetch = 0 : i64, scratch_operands = 0 : i64, tpu.core_type = #tpu.core_type<tc>, window_params = [{transform_indices = @transform_0, window_bounds = array<i64: 73>}, {transform_indices = @transform_1, window_bounds = array<i64: 4, 8, 128>}, {transform_indices = @transform_2, window_bounds = array<i64: 3, 8, 128>}]} {
    %c0 = arith.constant 0 : index
    %c0_0 = arith.constant 0 : index
    %c0_1 = arith.constant 0 : index
    %0 = vector.load %arg2[%c0, %c0_0, %c0_1] : memref<4x8x128xf32, #tpu.memory_space<vmem>>, vector<1x8x128xf32>
    %1 = vector.shape_cast %0 : vector<1x8x128xf32> to vector<8x128xf32>
    %c1 = arith.constant 1 : index
    %c0_2 = arith.constant 0 : index
    %c0_3 = arith.constant 0 : index
    %2 = vector.load %arg2[%c1, %c0_2, %c0_3] : memref<4x8x128xf32, #tpu.memory_space<vmem>>, vector<1x8x128xf32>
    %3 = vector.shape_cast %2 : vector<1x8x128xf32> to vector<8x128xf32>
    %c2 = arith.constant 2 : index
    %c0_4 = arith.constant 0 : index
    %c0_5 = arith.constant 0 : index
    %4 = vector.load %arg2[%c2, %c0_4, %c0_5] : memref<4x8x128xf32, #tpu.memory_space<vmem>>, vector<1x8x128xf32>
    %5 = vector.shape_cast %4 : vector<1x8x128xf32> to vector<8x128xf32>
    %c3 = arith.constant 3 : index
    %c0_6 = arith.constant 0 : index
    %c0_7 = arith.constant 0 : index
    %6 = vector.load %arg2[%c3, %c0_6, %c0_7] : memref<4x8x128xf32, #tpu.memory_space<vmem>>, vector<1x8x128xf32>
    %7 = vector.shape_cast %6 : vector<1x8x128xf32> to vector<8x128xf32>
    %c0_8 = arith.constant 0 : index
    %8 = memref.load %arg1[%c0_8] : memref<73xf32, #tpu.memory_space<smem>>
    %9 = vector.broadcast %8 : f32 to vector<8x128xf32>
    %10 = arith.mulf %1, %9 : vector<8x128xf32>
    %c5 = arith.constant 5 : index
    %11 = memref.load %arg1[%c5] : memref<73xf32, #tpu.memory_space<smem>>
    %12 = vector.broadcast %11 : f32 to vector<8x128xf32>
    %13 = arith.mulf %3, %12 : vector<8x128xf32>
    %14 = arith.addf %10, %13 : vector<8x128xf32>
    %c10 = arith.constant 10 : index
    %15 = memref.load %arg1[%c10] : memref<73xf32, #tpu.memory_space<smem>>
    %16 = vector.broadcast %15 : f32 to vector<8x128xf32>
    %17 = arith.mulf %5, %16 : vector<8x128xf32>
    %18 = arith.addf %14, %17 : vector<8x128xf32>
    %c15 = arith.constant 15 : index
    %19 = memref.load %arg1[%c15] : memref<73xf32, #tpu.memory_space<smem>>
    %20 = vector.broadcast %19 : f32 to vector<8x128xf32>
    %21 = arith.mulf %7, %20 : vector<8x128xf32>
    %22 = arith.addf %18, %21 : vector<8x128xf32>
    %c20 = arith.constant 20 : index
    %23 = memref.load %arg1[%c20] : memref<73xf32, #tpu.memory_space<smem>>
    %24 = vector.broadcast %23 : f32 to vector<8x128xf32>
    %25 = arith.addf %22, %24 : vector<8x128xf32>
    %cst = arith.constant 0.000000e+00 : f32
    %26 = vector.broadcast %cst : f32 to vector<8x128xf32>
    %27 = arith.maximumf %25, %26 : vector<8x128xf32>
    %c1_9 = arith.constant 1 : index
    %28 = memref.load %arg1[%c1_9] : memref<73xf32, #tpu.memory_space<smem>>
    %29 = vector.broadcast %28 : f32 to vector<8x128xf32>
    %30 = arith.mulf %1, %29 : vector<8x128xf32>
    %c6 = arith.constant 6 : index
    %31 = memref.load %arg1[%c6] : memref<73xf32, #tpu.memory_space<smem>>
    %32 = vector.broadcast %31 : f32 to vector<8x128xf32>
    %33 = arith.mulf %3, %32 : vector<8x128xf32>
    %34 = arith.addf %30, %33 : vector<8x128xf32>
    %c11 = arith.constant 11 : index
    %35 = memref.load %arg1[%c11] : memref<73xf32, #tpu.memory_space<smem>>
    %36 = vector.broadcast %35 : f32 to vector<8x128xf32>
    %37 = arith.mulf %5, %36 : vector<8x128xf32>
    %38 = arith.addf %34, %37 : vector<8x128xf32>
    %c16 = arith.constant 16 : index
    %39 = memref.load %arg1[%c16] : memref<73xf32, #tpu.memory_space<smem>>
    %40 = vector.broadcast %39 : f32 to vector<8x128xf32>
    %41 = arith.mulf %7, %40 : vector<8x128xf32>
    %42 = arith.addf %38, %41 : vector<8x128xf32>
    %c21 = arith.constant 21 : index
    %43 = memref.load %arg1[%c21] : memref<73xf32, #tpu.memory_space<smem>>
    %44 = vector.broadcast %43 : f32 to vector<8x128xf32>
    %45 = arith.addf %42, %44 : vector<8x128xf32>
    %cst_10 = arith.constant 0.000000e+00 : f32
    %46 = vector.broadcast %cst_10 : f32 to vector<8x128xf32>
    %47 = arith.maximumf %45, %46 : vector<8x128xf32>
    %c2_11 = arith.constant 2 : index
    %48 = memref.load %arg1[%c2_11] : memref<73xf32, #tpu.memory_space<smem>>
    %49 = vector.broadcast %48 : f32 to vector<8x128xf32>
    %50 = arith.mulf %1, %49 : vector<8x128xf32>
    %c7 = arith.constant 7 : index
    %51 = memref.load %arg1[%c7] : memref<73xf32, #tpu.memory_space<smem>>
    %52 = vector.broadcast %51 : f32 to vector<8x128xf32>
    %53 = arith.mulf %3, %52 : vector<8x128xf32>
    %54 = arith.addf %50, %53 : vector<8x128xf32>
    %c12 = arith.constant 12 : index
    %55 = memref.load %arg1[%c12] : memref<73xf32, #tpu.memory_space<smem>>
    %56 = vector.broadcast %55 : f32 to vector<8x128xf32>
    %57 = arith.mulf %5, %56 : vector<8x128xf32>
    %58 = arith.addf %54, %57 : vector<8x128xf32>
    %c17 = arith.constant 17 : index
    %59 = memref.load %arg1[%c17] : memref<73xf32, #tpu.memory_space<smem>>
    %60 = vector.broadcast %59 : f32 to vector<8x128xf32>
    %61 = arith.mulf %7, %60 : vector<8x128xf32>
    %62 = arith.addf %58, %61 : vector<8x128xf32>
    %c22 = arith.constant 22 : index
    %63 = memref.load %arg1[%c22] : memref<73xf32, #tpu.memory_space<smem>>
    %64 = vector.broadcast %63 : f32 to vector<8x128xf32>
    %65 = arith.addf %62, %64 : vector<8x128xf32>
    %cst_12 = arith.constant 0.000000e+00 : f32
    %66 = vector.broadcast %cst_12 : f32 to vector<8x128xf32>
    %67 = arith.maximumf %65, %66 : vector<8x128xf32>
    %c3_13 = arith.constant 3 : index
    %68 = memref.load %arg1[%c3_13] : memref<73xf32, #tpu.memory_space<smem>>
    %69 = vector.broadcast %68 : f32 to vector<8x128xf32>
    %70 = arith.mulf %1, %69 : vector<8x128xf32>
    %c8 = arith.constant 8 : index
    %71 = memref.load %arg1[%c8] : memref<73xf32, #tpu.memory_space<smem>>
    %72 = vector.broadcast %71 : f32 to vector<8x128xf32>
    %73 = arith.mulf %3, %72 : vector<8x128xf32>
    %74 = arith.addf %70, %73 : vector<8x128xf32>
    %c13 = arith.constant 13 : index
    %75 = memref.load %arg1[%c13] : memref<73xf32, #tpu.memory_space<smem>>
    %76 = vector.broadcast %75 : f32 to vector<8x128xf32>
    %77 = arith.mulf %5, %76 : vector<8x128xf32>
    %78 = arith.addf %74, %77 : vector<8x128xf32>
    %c18 = arith.constant 18 : index
    %79 = memref.load %arg1[%c18] : memref<73xf32, #tpu.memory_space<smem>>
    %80 = vector.broadcast %79 : f32 to vector<8x128xf32>
    %81 = arith.mulf %7, %80 : vector<8x128xf32>
    %82 = arith.addf %78, %81 : vector<8x128xf32>
    %c23 = arith.constant 23 : index
    %83 = memref.load %arg1[%c23] : memref<73xf32, #tpu.memory_space<smem>>
    %84 = vector.broadcast %83 : f32 to vector<8x128xf32>
    %85 = arith.addf %82, %84 : vector<8x128xf32>
    %cst_14 = arith.constant 0.000000e+00 : f32
    %86 = vector.broadcast %cst_14 : f32 to vector<8x128xf32>
    %87 = arith.maximumf %85, %86 : vector<8x128xf32>
    %c4 = arith.constant 4 : index
    %88 = memref.load %arg1[%c4] : memref<73xf32, #tpu.memory_space<smem>>
    %89 = vector.broadcast %88 : f32 to vector<8x128xf32>
    %90 = arith.mulf %1, %89 : vector<8x128xf32>
    %c9 = arith.constant 9 : index
    %91 = memref.load %arg1[%c9] : memref<73xf32, #tpu.memory_space<smem>>
    %92 = vector.broadcast %91 : f32 to vector<8x128xf32>
    %93 = arith.mulf %3, %92 : vector<8x128xf32>
    %94 = arith.addf %90, %93 : vector<8x128xf32>
    %c14 = arith.constant 14 : index
    %95 = memref.load %arg1[%c14] : memref<73xf32, #tpu.memory_space<smem>>
    %96 = vector.broadcast %95 : f32 to vector<8x128xf32>
    %97 = arith.mulf %5, %96 : vector<8x128xf32>
    %98 = arith.addf %94, %97 : vector<8x128xf32>
    %c19 = arith.constant 19 : index
    %99 = memref.load %arg1[%c19] : memref<73xf32, #tpu.memory_space<smem>>
    %100 = vector.broadcast %99 : f32 to vector<8x128xf32>
    %101 = arith.mulf %7, %100 : vector<8x128xf32>
    %102 = arith.addf %98, %101 : vector<8x128xf32>
    %c24 = arith.constant 24 : index
    %103 = memref.load %arg1[%c24] : memref<73xf32, #tpu.memory_space<smem>>
    %104 = vector.broadcast %103 : f32 to vector<8x128xf32>
    %105 = arith.addf %102, %104 : vector<8x128xf32>
    %cst_15 = arith.constant 0.000000e+00 : f32
    %106 = vector.broadcast %cst_15 : f32 to vector<8x128xf32>
    %107 = arith.maximumf %105, %106 : vector<8x128xf32>
    %c25 = arith.constant 25 : index
    %108 = memref.load %arg1[%c25] : memref<73xf32, #tpu.memory_space<smem>>
    %109 = vector.broadcast %108 : f32 to vector<8x128xf32>
    %110 = arith.mulf %27, %109 : vector<8x128xf32>
    %c30 = arith.constant 30 : index
    %111 = memref.load %arg1[%c30] : memref<73xf32, #tpu.memory_space<smem>>
    %112 = vector.broadcast %111 : f32 to vector<8x128xf32>
    %113 = arith.mulf %47, %112 : vector<8x128xf32>
    %114 = arith.addf %110, %113 : vector<8x128xf32>
    %c35 = arith.constant 35 : index
    %115 = memref.load %arg1[%c35] : memref<73xf32, #tpu.memory_space<smem>>
    %116 = vector.broadcast %115 : f32 to vector<8x128xf32>
    %117 = arith.mulf %67, %116 : vector<8x128xf32>
    %118 = arith.addf %114, %117 : vector<8x128xf32>
    %c40 = arith.constant 40 : index
    %119 = memref.load %arg1[%c40] : memref<73xf32, #tpu.memory_space<smem>>
    %120 = vector.broadcast %119 : f32 to vector<8x128xf32>
    %121 = arith.mulf %87, %120 : vector<8x128xf32>
    %122 = arith.addf %118, %121 : vector<8x128xf32>
    %c45 = arith.constant 45 : index
    %123 = memref.load %arg1[%c45] : memref<73xf32, #tpu.memory_space<smem>>
    %124 = vector.broadcast %123 : f32 to vector<8x128xf32>
    %125 = arith.mulf %107, %124 : vector<8x128xf32>
    %126 = arith.addf %122, %125 : vector<8x128xf32>
    %c50 = arith.constant 50 : index
    %127 = memref.load %arg1[%c50] : memref<73xf32, #tpu.memory_space<smem>>
    %128 = vector.broadcast %127 : f32 to vector<8x128xf32>
    %129 = arith.addf %126, %128 : vector<8x128xf32>
    %cst_16 = arith.constant 0.000000e+00 : f32
    %130 = vector.broadcast %cst_16 : f32 to vector<8x128xf32>
    %131 = arith.maximumf %129, %130 : vector<8x128xf32>
    %c26 = arith.constant 26 : index
    %132 = memref.load %arg1[%c26] : memref<73xf32, #tpu.memory_space<smem>>
    %133 = vector.broadcast %132 : f32 to vector<8x128xf32>
    %134 = arith.mulf %27, %133 : vector<8x128xf32>
    %c31 = arith.constant 31 : index
    %135 = memref.load %arg1[%c31] : memref<73xf32, #tpu.memory_space<smem>>
    %136 = vector.broadcast %135 : f32 to vector<8x128xf32>
    %137 = arith.mulf %47, %136 : vector<8x128xf32>
    %138 = arith.addf %134, %137 : vector<8x128xf32>
    %c36 = arith.constant 36 : index
    %139 = memref.load %arg1[%c36] : memref<73xf32, #tpu.memory_space<smem>>
    %140 = vector.broadcast %139 : f32 to vector<8x128xf32>
    %141 = arith.mulf %67, %140 : vector<8x128xf32>
    %142 = arith.addf %138, %141 : vector<8x128xf32>
    %c41 = arith.constant 41 : index
    %143 = memref.load %arg1[%c41] : memref<73xf32, #tpu.memory_space<smem>>
    %144 = vector.broadcast %143 : f32 to vector<8x128xf32>
    %145 = arith.mulf %87, %144 : vector<8x128xf32>
    %146 = arith.addf %142, %145 : vector<8x128xf32>
    %c46 = arith.constant 46 : index
    %147 = memref.load %arg1[%c46] : memref<73xf32, #tpu.memory_space<smem>>
    %148 = vector.broadcast %147 : f32 to vector<8x128xf32>
    %149 = arith.mulf %107, %148 : vector<8x128xf32>
    %150 = arith.addf %146, %149 : vector<8x128xf32>
    %c51 = arith.constant 51 : index
    %151 = memref.load %arg1[%c51] : memref<73xf32, #tpu.memory_space<smem>>
    %152 = vector.broadcast %151 : f32 to vector<8x128xf32>
    %153 = arith.addf %150, %152 : vector<8x128xf32>
    %cst_17 = arith.constant 0.000000e+00 : f32
    %154 = vector.broadcast %cst_17 : f32 to vector<8x128xf32>
    %155 = arith.maximumf %153, %154 : vector<8x128xf32>
    %c27 = arith.constant 27 : index
    %156 = memref.load %arg1[%c27] : memref<73xf32, #tpu.memory_space<smem>>
    %157 = vector.broadcast %156 : f32 to vector<8x128xf32>
    %158 = arith.mulf %27, %157 : vector<8x128xf32>
    %c32 = arith.constant 32 : index
    %159 = memref.load %arg1[%c32] : memref<73xf32, #tpu.memory_space<smem>>
    %160 = vector.broadcast %159 : f32 to vector<8x128xf32>
    %161 = arith.mulf %47, %160 : vector<8x128xf32>
    %162 = arith.addf %158, %161 : vector<8x128xf32>
    %c37 = arith.constant 37 : index
    %163 = memref.load %arg1[%c37] : memref<73xf32, #tpu.memory_space<smem>>
    %164 = vector.broadcast %163 : f32 to vector<8x128xf32>
    %165 = arith.mulf %67, %164 : vector<8x128xf32>
    %166 = arith.addf %162, %165 : vector<8x128xf32>
    %c42 = arith.constant 42 : index
    %167 = memref.load %arg1[%c42] : memref<73xf32, #tpu.memory_space<smem>>
    %168 = vector.broadcast %167 : f32 to vector<8x128xf32>
    %169 = arith.mulf %87, %168 : vector<8x128xf32>
    %170 = arith.addf %166, %169 : vector<8x128xf32>
    %c47 = arith.constant 47 : index
    %171 = memref.load %arg1[%c47] : memref<73xf32, #tpu.memory_space<smem>>
    %172 = vector.broadcast %171 : f32 to vector<8x128xf32>
    %173 = arith.mulf %107, %172 : vector<8x128xf32>
    %174 = arith.addf %170, %173 : vector<8x128xf32>
    %c52 = arith.constant 52 : index
    %175 = memref.load %arg1[%c52] : memref<73xf32, #tpu.memory_space<smem>>
    %176 = vector.broadcast %175 : f32 to vector<8x128xf32>
    %177 = arith.addf %174, %176 : vector<8x128xf32>
    %cst_18 = arith.constant 0.000000e+00 : f32
    %178 = vector.broadcast %cst_18 : f32 to vector<8x128xf32>
    %179 = arith.maximumf %177, %178 : vector<8x128xf32>
    %c28 = arith.constant 28 : index
    %180 = memref.load %arg1[%c28] : memref<73xf32, #tpu.memory_space<smem>>
    %181 = vector.broadcast %180 : f32 to vector<8x128xf32>
    %182 = arith.mulf %27, %181 : vector<8x128xf32>
    %c33 = arith.constant 33 : index
    %183 = memref.load %arg1[%c33] : memref<73xf32, #tpu.memory_space<smem>>
    %184 = vector.broadcast %183 : f32 to vector<8x128xf32>
    %185 = arith.mulf %47, %184 : vector<8x128xf32>
    %186 = arith.addf %182, %185 : vector<8x128xf32>
    %c38 = arith.constant 38 : index
    %187 = memref.load %arg1[%c38] : memref<73xf32, #tpu.memory_space<smem>>
    %188 = vector.broadcast %187 : f32 to vector<8x128xf32>
    %189 = arith.mulf %67, %188 : vector<8x128xf32>
    %190 = arith.addf %186, %189 : vector<8x128xf32>
    %c43 = arith.constant 43 : index
    %191 = memref.load %arg1[%c43] : memref<73xf32, #tpu.memory_space<smem>>
    %192 = vector.broadcast %191 : f32 to vector<8x128xf32>
    %193 = arith.mulf %87, %192 : vector<8x128xf32>
    %194 = arith.addf %190, %193 : vector<8x128xf32>
    %c48 = arith.constant 48 : index
    %195 = memref.load %arg1[%c48] : memref<73xf32, #tpu.memory_space<smem>>
    %196 = vector.broadcast %195 : f32 to vector<8x128xf32>
    %197 = arith.mulf %107, %196 : vector<8x128xf32>
    %198 = arith.addf %194, %197 : vector<8x128xf32>
    %c53 = arith.constant 53 : index
    %199 = memref.load %arg1[%c53] : memref<73xf32, #tpu.memory_space<smem>>
    %200 = vector.broadcast %199 : f32 to vector<8x128xf32>
    %201 = arith.addf %198, %200 : vector<8x128xf32>
    %cst_19 = arith.constant 0.000000e+00 : f32
    %202 = vector.broadcast %cst_19 : f32 to vector<8x128xf32>
    %203 = arith.maximumf %201, %202 : vector<8x128xf32>
    %c29 = arith.constant 29 : index
    %204 = memref.load %arg1[%c29] : memref<73xf32, #tpu.memory_space<smem>>
    %205 = vector.broadcast %204 : f32 to vector<8x128xf32>
    %206 = arith.mulf %27, %205 : vector<8x128xf32>
    %c34 = arith.constant 34 : index
    %207 = memref.load %arg1[%c34] : memref<73xf32, #tpu.memory_space<smem>>
    %208 = vector.broadcast %207 : f32 to vector<8x128xf32>
    %209 = arith.mulf %47, %208 : vector<8x128xf32>
    %210 = arith.addf %206, %209 : vector<8x128xf32>
    %c39 = arith.constant 39 : index
    %211 = memref.load %arg1[%c39] : memref<73xf32, #tpu.memory_space<smem>>
    %212 = vector.broadcast %211 : f32 to vector<8x128xf32>
    %213 = arith.mulf %67, %212 : vector<8x128xf32>
    %214 = arith.addf %210, %213 : vector<8x128xf32>
    %c44 = arith.constant 44 : index
    %215 = memref.load %arg1[%c44] : memref<73xf32, #tpu.memory_space<smem>>
    %216 = vector.broadcast %215 : f32 to vector<8x128xf32>
    %217 = arith.mulf %87, %216 : vector<8x128xf32>
    %218 = arith.addf %214, %217 : vector<8x128xf32>
    %c49 = arith.constant 49 : index
    %219 = memref.load %arg1[%c49] : memref<73xf32, #tpu.memory_space<smem>>
    %220 = vector.broadcast %219 : f32 to vector<8x128xf32>
    %221 = arith.mulf %107, %220 : vector<8x128xf32>
    %222 = arith.addf %218, %221 : vector<8x128xf32>
    %c54 = arith.constant 54 : index
    %223 = memref.load %arg1[%c54] : memref<73xf32, #tpu.memory_space<smem>>
    %224 = vector.broadcast %223 : f32 to vector<8x128xf32>
    %225 = arith.addf %222, %224 : vector<8x128xf32>
    %cst_20 = arith.constant 0.000000e+00 : f32
    %226 = vector.broadcast %cst_20 : f32 to vector<8x128xf32>
    %227 = arith.maximumf %225, %226 : vector<8x128xf32>
    %c55 = arith.constant 55 : index
    %228 = memref.load %arg1[%c55] : memref<73xf32, #tpu.memory_space<smem>>
    %229 = vector.broadcast %228 : f32 to vector<8x128xf32>
    %230 = arith.mulf %131, %229 : vector<8x128xf32>
    %c58 = arith.constant 58 : index
    %231 = memref.load %arg1[%c58] : memref<73xf32, #tpu.memory_space<smem>>
    %232 = vector.broadcast %231 : f32 to vector<8x128xf32>
    %233 = arith.mulf %155, %232 : vector<8x128xf32>
    %234 = arith.addf %230, %233 : vector<8x128xf32>
    %c61 = arith.constant 61 : index
    %235 = memref.load %arg1[%c61] : memref<73xf32, #tpu.memory_space<smem>>
    %236 = vector.broadcast %235 : f32 to vector<8x128xf32>
    %237 = arith.mulf %179, %236 : vector<8x128xf32>
    %238 = arith.addf %234, %237 : vector<8x128xf32>
    %c64 = arith.constant 64 : index
    %239 = memref.load %arg1[%c64] : memref<73xf32, #tpu.memory_space<smem>>
    %240 = vector.broadcast %239 : f32 to vector<8x128xf32>
    %241 = arith.mulf %203, %240 : vector<8x128xf32>
    %242 = arith.addf %238, %241 : vector<8x128xf32>
    %c67 = arith.constant 67 : index
    %243 = memref.load %arg1[%c67] : memref<73xf32, #tpu.memory_space<smem>>
    %244 = vector.broadcast %243 : f32 to vector<8x128xf32>
    %245 = arith.mulf %227, %244 : vector<8x128xf32>
    %246 = arith.addf %242, %245 : vector<8x128xf32>
    %c70 = arith.constant 70 : index
    %247 = memref.load %arg1[%c70] : memref<73xf32, #tpu.memory_space<smem>>
    %248 = vector.broadcast %247 : f32 to vector<8x128xf32>
    %249 = arith.addf %246, %248 : vector<8x128xf32>
    %c56 = arith.constant 56 : index
    %250 = memref.load %arg1[%c56] : memref<73xf32, #tpu.memory_space<smem>>
    %251 = vector.broadcast %250 : f32 to vector<8x128xf32>
    %252 = arith.mulf %131, %251 : vector<8x128xf32>
    %c59 = arith.constant 59 : index
    %253 = memref.load %arg1[%c59] : memref<73xf32, #tpu.memory_space<smem>>
    %254 = vector.broadcast %253 : f32 to vector<8x128xf32>
    %255 = arith.mulf %155, %254 : vector<8x128xf32>
    %256 = arith.addf %252, %255 : vector<8x128xf32>
    %c62 = arith.constant 62 : index
    %257 = memref.load %arg1[%c62] : memref<73xf32, #tpu.memory_space<smem>>
    %258 = vector.broadcast %257 : f32 to vector<8x128xf32>
    %259 = arith.mulf %179, %258 : vector<8x128xf32>
    %260 = arith.addf %256, %259 : vector<8x128xf32>
    %c65 = arith.constant 65 : index
    %261 = memref.load %arg1[%c65] : memref<73xf32, #tpu.memory_space<smem>>
    %262 = vector.broadcast %261 : f32 to vector<8x128xf32>
    %263 = arith.mulf %203, %262 : vector<8x128xf32>
    %264 = arith.addf %260, %263 : vector<8x128xf32>
    %c68 = arith.constant 68 : index
    %265 = memref.load %arg1[%c68] : memref<73xf32, #tpu.memory_space<smem>>
    %266 = vector.broadcast %265 : f32 to vector<8x128xf32>
    %267 = arith.mulf %227, %266 : vector<8x128xf32>
    %268 = arith.addf %264, %267 : vector<8x128xf32>
    %c71 = arith.constant 71 : index
    %269 = memref.load %arg1[%c71] : memref<73xf32, #tpu.memory_space<smem>>
    %270 = vector.broadcast %269 : f32 to vector<8x128xf32>
    %271 = arith.addf %268, %270 : vector<8x128xf32>
    %c57 = arith.constant 57 : index
    %272 = memref.load %arg1[%c57] : memref<73xf32, #tpu.memory_space<smem>>
    %273 = vector.broadcast %272 : f32 to vector<8x128xf32>
    %274 = arith.mulf %131, %273 : vector<8x128xf32>
    %c60 = arith.constant 60 : index
    %275 = memref.load %arg1[%c60] : memref<73xf32, #tpu.memory_space<smem>>
    %276 = vector.broadcast %275 : f32 to vector<8x128xf32>
    %277 = arith.mulf %155, %276 : vector<8x128xf32>
    %278 = arith.addf %274, %277 : vector<8x128xf32>
    %c63 = arith.constant 63 : index
    %279 = memref.load %arg1[%c63] : memref<73xf32, #tpu.memory_space<smem>>
    %280 = vector.broadcast %279 : f32 to vector<8x128xf32>
    %281 = arith.mulf %179, %280 : vector<8x128xf32>
    %282 = arith.addf %278, %281 : vector<8x128xf32>
    %c66 = arith.constant 66 : index
    %283 = memref.load %arg1[%c66] : memref<73xf32, #tpu.memory_space<smem>>
    %284 = vector.broadcast %283 : f32 to vector<8x128xf32>
    %285 = arith.mulf %203, %284 : vector<8x128xf32>
    %286 = arith.addf %282, %285 : vector<8x128xf32>
    %c69 = arith.constant 69 : index
    %287 = memref.load %arg1[%c69] : memref<73xf32, #tpu.memory_space<smem>>
    %288 = vector.broadcast %287 : f32 to vector<8x128xf32>
    %289 = arith.mulf %227, %288 : vector<8x128xf32>
    %290 = arith.addf %286, %289 : vector<8x128xf32>
    %c72 = arith.constant 72 : index
    %291 = memref.load %arg1[%c72] : memref<73xf32, #tpu.memory_space<smem>>
    %292 = vector.broadcast %291 : f32 to vector<8x128xf32>
    %293 = arith.addf %290, %292 : vector<8x128xf32>
    %c0_21 = arith.constant 0 : index
    %c0_22 = arith.constant 0 : index
    %c0_23 = arith.constant 0 : index
    %294 = vector.load %arg3[%c0_21, %c0_22, %c0_23] : memref<3x8x128xf32, #tpu.memory_space<vmem>>, vector<1x8x128xf32>
    %295 = vector.shape_cast %294 : vector<1x8x128xf32> to vector<8x128xf32>
    %296 = vector.shape_cast %249 : vector<8x128xf32> to vector<1x8x128xf32>
    tpu.vector_store %arg3[%c0_21, %c0_22, %c0_23], %296 {strides = array<i32>} : memref<3x8x128xf32, #tpu.memory_space<vmem>>, vector<1x8x128xf32>,
    %c1_24 = arith.constant 1 : index
    %c0_25 = arith.constant 0 : index
    %c0_26 = arith.constant 0 : index
    %297 = vector.load %arg3[%c1_24, %c0_25, %c0_26] : memref<3x8x128xf32, #tpu.memory_space<vmem>>, vector<1x8x128xf32>
    %298 = vector.shape_cast %297 : vector<1x8x128xf32> to vector<8x128xf32>
    %299 = vector.shape_cast %271 : vector<8x128xf32> to vector<1x8x128xf32>
    tpu.vector_store %arg3[%c1_24, %c0_25, %c0_26], %299 {strides = array<i32>} : memref<3x8x128xf32, #tpu.memory_space<vmem>>, vector<1x8x128xf32>,
    %c2_27 = arith.constant 2 : index
    %c0_28 = arith.constant 0 : index
    %c0_29 = arith.constant 0 : index
    %300 = vector.load %arg3[%c2_27, %c0_28, %c0_29] : memref<3x8x128xf32, #tpu.memory_space<vmem>>, vector<1x8x128xf32>
    %301 = vector.shape_cast %300 : vector<1x8x128xf32> to vector<8x128xf32>
    %302 = vector.shape_cast %293 : vector<8x128xf32> to vector<1x8x128xf32>
    tpu.vector_store %arg3[%c2_27, %c0_28, %c0_29], %302 {strides = array<i32>} : memref<3x8x128xf32, #tpu.memory_space<vmem>>, vector<1x8x128xf32>,
    return
  }
  func.func @transform_0(%arg0: i32) -> i32 {
    %c0_i32 = arith.constant 0 : i32
    %c0_i32_0 = arith.constant 0 : i32
    return %c0_i32 : i32
  }
  func.func @transform_1(%arg0: i32) -> (i32, i32, i32) {
    %c0_i32 = arith.constant 0 : i32
    %c0_i32_0 = arith.constant 0 : i32
    %c0_i32_1 = arith.constant 0 : i32
    return %c0_i32, %c0_i32_0, %arg0 : i32, i32, i32
  }
  func.func @transform_2(%arg0: i32) -> (i32, i32, i32) {
    %c0_i32 = arith.constant 0 : i32
    %c0_i32_0 = arith.constant 0 : i32
    %c0_i32_1 = arith.constant 0 : i32
    return %c0_i32, %c0_i32_0, %arg0 : i32, i32, i32
  }
}

</mosaic_0001>

<llo_original>
// kernel: mymodel_forward.1
$region0: #{mymodel_forward.1}
  #allocation0 [shape = 'u32[]', space=smem, size = 0x4, offset = 0x4, fixed_abs, tag = 'smem constant byte address 0x4 - core index']
  #allocation1 [shape = 'u32[144,128]{1,0:T(1,128)}', space=vmem, size = 0x12000, scoped, tag = 'internal scratch']
  %s0 = inlined_call_operand.vmem [shape: f32[73], index: 0, kind: input, shape index: {}]
  %s1 = inlined_call_operand.vmem [shape: f32[4,8,128], index: 1, kind: input, shape index: {}]
  %s2 = inlined_call_operand.vmem [shape: f32[3,8,128], index: 2, kind: output, shape index: {}]
  %s3 = sld [smem:[#allocation0]]
  $region22: #{mymodel_forward.1} parent=0
    _
  %s5 = ssub.s32 1, %s3
  %s6 = scalar_select 0, %s5, %s3
  $region1: #{mymodel_forward.1} parent=0
    #allocation2 [shape = 'u8[512]{0}', space=smem, size = 0x200, scoped, tag = 'input window, operand 0, single buffered']
    #allocation3 [shape = 's32[1]{0}', space=sflag, size = 0x4, scoped, tag = 'scoped memory for mymodel_forward.1']
    %7 = vsyncpa [#allocation3], 0
    // Predicated region
    $region2: #{mymodel_forward.1} parent=1 // pred_check
      _
    $region3: #{mymodel_forward.1} parent=1 // pred_check_branch
      %9 = sbr.rel (0) target = $region5
    $region4: #{mymodel_forward.1} parent=1 // pred_region
      %s11 = ssub.s32 16, 16
      %12 = vsyncadd [#allocation3], %s11
      %s14 = sshll.u32 %s0, 4
      %s15 = int_to_ptr.vmem [resolvable:$true] %s14
      %17 = dma.vmem_to_smem %s15, 16, [#allocation2], [#allocation3]
    $region5: #{mymodel_forward.1} parent=1 // pred_fallthru
      _
    // Predicated region
    $region6: #{mymodel_forward.1} parent=1 // pred_check
      _
    $region7: #{mymodel_forward.1} parent=1 // pred_check_branch
      %19 = sbr.rel (0) target = $region9
    $region8: #{mymodel_forward.1} parent=1 // pred_region
      _
    $region9: #{mymodel_forward.1} parent=1 // pred_fallthru
      _
    // Predicated region
    $region10: #{mymodel_forward.1} parent=1 // pred_check
      _
    $region11: #{mymodel_forward.1} parent=1 // pred_check_branch
      %21 = sbr.rel (0) target = $region13
    $region12: #{mymodel_forward.1} parent=1 // pred_region
      %22 = dma.done [#allocation3], 16
    $region13: #{mymodel_forward.1} parent=1 // pred_fallthru
      _
    %23 = sfence
    %v24 = vld [vmem:[%s1] sm:$0xff]
    %s25 = scalar_lea.vmem %s1, 8
    %v26 = vld [vmem:[%s25] sm:$0xff]
    %s27 = scalar_lea.vmem %s1, 16
    %v28 = vld [vmem:[%s27] sm:$0xff]
    %s29 = scalar_lea.vmem %s1, 24
    %v30 = vld [vmem:[%s29] sm:$0xff]
    %s31 = sld [smem:[#allocation2]]
    %v32 = vstv %s31
    %v33 = vmul.f32 %v24, %v32
    %s34 = sld [smem:[#allocation2 + $0x5]]
    %v35 = vstv %s34
    %v36 = vmul.f32 %v26, %v35
    %v37 = vadd.f32 %v33, %v36
    %s38 = sld [smem:[#allocation2 + $0xa]]
    %v39 = vstv %s38
    %v40 = vmul.f32 %v28, %v39
    %v41 = vadd.f32 %v37, %v40
    %s42 = sld [smem:[#allocation2 + $0xf]]
    %v43 = vstv %s42
    %v44 = vmul.f32 %v30, %v43
    %v45 = vadd.f32 %v41, %v44
    %s46 = sld [smem:[#allocation2 + $0x14]]
    %v47 = vstv %s46
    %v48 = vadd.f32 %v45, %v47
    %v49 = vmax.f32 %v48, 0.0
    %s50 = sld [smem:[#allocation2 + $0x1]]
    %v51 = vstv %s50
    %v52 = vmul.f32 %v24, %v51
    %s53 = sld [smem:[#allocation2 + $0x6]]
    %v54 = vstv %s53
    %v55 = vmul.f32 %v26, %v54
    %v56 = vadd.f32 %v52, %v55
    %s57 = sld [smem:[#allocation2 + $0xb]]
    %v58 = vstv %s57
    %v59 = vmul.f32 %v28, %v58
    %v60 = vadd.f32 %v56, %v59
    %s61 = sld [smem:[#allocation2 + $0x10]]
    %v62 = vstv %s61
    %v63 = vmul.f32 %v30, %v62
    %v64 = vadd.f32 %v60, %v63
    %s65 = sld [smem:[#allocation2 + $0x15]]
    %v66 = vstv %s65
    %v67 = vadd.f32 %v64, %v66
    %v68 = vmax.f32 %v67, 0.0
    %s69 = sld [smem:[#allocation2 + $0x2]]
    %v70 = vstv %s69
    %v71 = vmul.f32 %v24, %v70
    %s72 = sld [smem:[#allocation2 + $0x7]]
    %v73 = vstv %s72
    %v74 = vmul.f32 %v26, %v73
    %v75 = vadd.f32 %v71, %v74
    %s76 = sld [smem:[#allocation2 + $0xc]]
    %v77 = vstv %s76
    %v78 = vmul.f32 %v28, %v77
    %v79 = vadd.f32 %v75, %v78
    %s80 = sld [smem:[#allocation2 + $0x11]]
    %v81 = vstv %s80
    %v82 = vmul.f32 %v30, %v81
    %v83 = vadd.f32 %v79, %v82
    %s84 = sld [smem:[#allocation2 + $0x16]]
    %v85 = vstv %s84
    %v86 = vadd.f32 %v83, %v85
    %v87 = vmax.f32 %v86, 0.0
    %s88 = sld [smem:[#allocation2 + $0x3]]
    %v89 = vstv %s88
    %v90 = vmul.f32 %v24, %v89
    %s91 = sld [smem:[#allocation2 + $0x8]]
    %v92 = vstv %s91
    %v93 = vmul.f32 %v26, %v92
    %v94 = vadd.f32 %v90, %v93
    %s95 = sld [smem:[#allocation2 + $0xd]]
    %v96 = vstv %s95
    %v97 = vmul.f32 %v28, %v96
    %v98 = vadd.f32 %v94, %v97
    %s99 = sld [smem:[#allocation2 + $0x12]]
    %v100 = vstv %s99
    %v101 = vmul.f32 %v30, %v100
    %v102 = vadd.f32 %v98, %v101
    %s103 = sld [smem:[#allocation2 + $0x17]]
    %v104 = vstv %s103
    %v105 = vadd.f32 %v102, %v104
    %v106 = vmax.f32 %v105, 0.0
    %s107 = sld [smem:[#allocation2 + $0x4]]
    %v108 = vstv %s107
    %v109 = vmul.f32 %v24, %v108
    %s110 = sld [smem:[#allocation2 + $0x9]]
    %v111 = vstv %s110
    %v112 = vmul.f32 %v26, %v111
    %v113 = vadd.f32 %v109, %v112
    %s114 = sld [smem:[#allocation2 + $0xe]]
    %v115 = vstv %s114
    %v116 = vmul.f32 %v28, %v115
    %v117 = vadd.f32 %v113, %v116
    %s118 = sld [smem:[#allocation2 + $0x13]]
    %v119 = vstv %s118
    %v120 = vmul.f32 %v30, %v119
    %v121 = vadd.f32 %v117, %v120
    %s122 = sld [smem:[#allocation2 + $0x18]]
    %v123 = vstv %s122
    %v124 = vadd.f32 %v121, %v123
    %v125 = vmax.f32 %v124, 0.0
    %s126 = sld [smem:[#allocation2 + $0x19]]
    %v127 = vstv %s126
    %v128 = vmul.f32 %v49, %v127
    %s129 = sld [smem:[#allocation2 + $0x1e]]
    %v130 = vstv %s129
    %v131 = vmul.f32 %v68, %v130
    %v132 = vadd.f32 %v128, %v131
    %s133 = sld [smem:[#allocation2 + $0x23]]
    %v134 = vstv %s133
    %v135 = vmul.f32 %v87, %v134
    %v136 = vadd.f32 %v132, %v135
    %s137 = sld [smem:[#allocation2 + $0x28]]
    %v138 = vstv %s137
    %v139 = vmul.f32 %v106, %v138
    %v140 = vadd.f32 %v136, %v139
    %s141 = sld [smem:[#allocation2 + $0x2d]]
    %v142 = vstv %s141
    %v143 = vmul.f32 %v125, %v142
    %v144 = vadd.f32 %v140, %v143
    %s145 = sld [smem:[#allocation2 + $0x32]]
    %v146 = vstv %s145
    %v147 = vadd.f32 %v144, %v146
    %v148 = vmax.f32 %v147, 0.0
    %s149 = sld [smem:[#allocation2 + $0x1a]]
    %v150 = vstv %s149
    %v151 = vmul.f32 %v49, %v150
    %s152 = sld [smem:[#allocation2 + $0x1f]]
    %v153 = vstv %s152
    %v154 = vmul.f32 %v68, %v153
    %v155 = vadd.f32 %v151, %v154
    %s156 = sld [smem:[#allocation2 + $0x24]]
    %v157 = vstv %s156
    %v158 = vmul.f32 %v87, %v157
    %v159 = vadd.f32 %v155, %v158
    %s160 = sld [smem:[#allocation2 + $0x29]]
    %v161 = vstv %s160
    %v162 = vmul.f32 %v106, %v161
    %v163 = vadd.f32 %v159, %v162
    %s164 = sld [smem:[#allocation2 + $0x2e]]
    %v165 = vstv %s164
    %v166 = vmul.f32 %v125, %v165
    %v167 = vadd.f32 %v163, %v166
    %s168 = sld [smem:[#allocation2 + $0x33]]
    %v169 = vstv %s168
    %v170 = vadd.f32 %v167, %v169
    %v171 = vmax.f32 %v170, 0.0
    %s172 = sld [smem:[#allocation2 + $0x1b]]
    %v173 = vstv %s172
    %v174 = vmul.f32 %v49, %v173
    %s175 = sld [smem:[#allocation2 + $0x20]]
    %v176 = vstv %s175
    %v177 = vmul.f32 %v68, %v176
    %v178 = vadd.f32 %v174, %v177
    %s179 = sld [smem:[#allocation2 + $0x25]]
    %v180 = vstv %s179
    %v181 = vmul.f32 %v87, %v180
    %v182 = vadd.f32 %v178, %v181
    %s183 = sld [smem:[#allocation2 + $0x2a]]
    %v184 = vstv %s183
    %v185 = vmul.f32 %v106, %v184
    %v186 = vadd.f32 %v182, %v185
    %s187 = sld [smem:[#allocation2 + $0x2f]]
    %v188 = vstv %s187
    %v189 = vmul.f32 %v125, %v188
    %v190 = vadd.f32 %v186, %v189
    %s191 = sld [smem:[#allocation2 + $0x34]]
    %v192 = vstv %s191
    %v193 = vadd.f32 %v190, %v192
    %v194 = vmax.f32 %v193, 0.0
    %s195 = sld [smem:[#allocation2 + $0x1c]]
    %v196 = vstv %s195
    %v197 = vmul.f32 %v49, %v196
    %s198 = sld [smem:[#allocation2 + $0x21]]
    %v199 = vstv %s198
    %v200 = vmul.f32 %v68, %v199
    %v201 = vadd.f32 %v197, %v200
    %s202 = sld [smem:[#allocation2 + $0x26]]
    %v203 = vstv %s202
    %v204 = vmul.f32 %v87, %v203
    %v205 = vadd.f32 %v201, %v204
    %s206 = sld [smem:[#allocation2 + $0x2b]]
    %v207 = vstv %s206
    %v208 = vmul.f32 %v106, %v207
    %v209 = vadd.f32 %v205, %v208
    %s210 = sld [smem:[#allocation2 + $0x30]]
    %v211 = vstv %s210
    %v212 = vmul.f32 %v125, %v211
    %v213 = vadd.f32 %v209, %v212
    %s214 = sld [smem:[#allocation2 + $0x35]]
    %v215 = vstv %s214
    %v216 = vadd.f32 %v213, %v215
    %v217 = vmax.f32 %v216, 0.0
    %s218 = sld [smem:[#allocation2 + $0x1d]]
    %v219 = vstv %s218
    %v220 = vmul.f32 %v49, %v219
    %s221 = sld [smem:[#allocation2 + $0x22]]
    %v222 = vstv %s221
    %v223 = vmul.f32 %v68, %v222
    %v224 = vadd.f32 %v220, %v223
    %s225 = sld [smem:[#allocation2 + $0x27]]
    %v226 = vstv %s225
    %v227 = vmul.f32 %v87, %v226
    %v228 = vadd.f32 %v224, %v227
    %s229 = sld [smem:[#allocation2 + $0x2c]]
    %v230 = vstv %s229
    %v231 = vmul.f32 %v106, %v230
    %v232 = vadd.f32 %v228, %v231
    %s233 = sld [smem:[#allocation2 + $0x31]]
    %v234 = vstv %s233
    %v235 = vmul.f32 %v125, %v234
    %v236 = vadd.f32 %v232, %v235
    %s237 = sld [smem:[#allocation2 + $0x36]]
    %v238 = vstv %s237
    %v239 = vadd.f32 %v236, %v238
    %v240 = vmax.f32 %v239, 0.0
    %s241 = sld [smem:[#allocation2 + $0x37]]
    %v242 = vstv %s241
    %v243 = vmul.f32 %v148, %v242
    %s244 = sld [smem:[#allocation2 + $0x3a]]
    %v245 = vstv %s244
    %v246 = vmul.f32 %v171, %v245
    %v247 = vadd.f32 %v243, %v246
    %s248 = sld [smem:[#allocation2 + $0x3d]]
    %v249 = vstv %s248
    %v250 = vmul.f32 %v194, %v249
    %v251 = vadd.f32 %v247, %v250
    %s252 = sld [smem:[#allocation2 + $0x40]]
    %v253 = vstv %s252
    %v254 = vmul.f32 %v217, %v253
    %v255 = vadd.f32 %v251, %v254
    %s256 = sld [smem:[#allocation2 + $0x43]]
    %v257 = vstv %s256
    %v258 = vmul.f32 %v240, %v257
    %v259 = vadd.f32 %v255, %v258
    %s260 = sld [smem:[#allocation2 + $0x46]]
    %v261 = vstv %s260
    %v262 = vadd.f32 %v259, %v261
    %s263 = sld [smem:[#allocation2 + $0x38]]
    %v264 = vstv %s263
    %v265 = vmul.f32 %v148, %v264
    %s266 = sld [smem:[#allocation2 + $0x3b]]
    %v267 = vstv %s266
    %v268 = vmul.f32 %v171, %v267
    %v269 = vadd.f32 %v265, %v268
    %s270 = sld [smem:[#allocation2 + $0x3e]]
    %v271 = vstv %s270
    %v272 = vmul.f32 %v194, %v271
    %v273 = vadd.f32 %v269, %v272
    %s274 = sld [smem:[#allocation2 + $0x41]]
    %v275 = vstv %s274
    %v276 = vmul.f32 %v217, %v275
    %v277 = vadd.f32 %v273, %v276
    %s278 = sld [smem:[#allocation2 + $0x44]]
    %v279 = vstv %s278
    %v280 = vmul.f32 %v240, %v279
    %v281 = vadd.f32 %v277, %v280
    %s282 = sld [smem:[#allocation2 + $0x47]]
    %v283 = vstv %s282
    %v284 = vadd.f32 %v281, %v283
    %s285 = sld [smem:[#allocation2 + $0x39]]
    %v286 = vstv %s285
    %v287 = vmul.f32 %v148, %v286
    %s288 = sld [smem:[#allocation2 + $0x3c]]
    %v289 = vstv %s288
    %v290 = vmul.f32 %v171, %v289
    %v291 = vadd.f32 %v287, %v290
    %s292 = sld [smem:[#allocation2 + $0x3f]]
    %v293 = vstv %s292
    %v294 = vmul.f32 %v194, %v293
    %v295 = vadd.f32 %v291, %v294
    %s296 = sld [smem:[#allocation2 + $0x42]]
    %v297 = vstv %s296
    %v298 = vmul.f32 %v217, %v297
    %v299 = vadd.f32 %v295, %v298
    %s300 = sld [smem:[#allocation2 + $0x45]]
    %v301 = vstv %s300
    %v302 = vmul.f32 %v240, %v301
    %v303 = vadd.f32 %v299, %v302
    %s304 = sld [smem:[#allocation2 + $0x48]]
    %v305 = vstv %s304
    %v306 = vadd.f32 %v303, %v305
    %307 = vst [vmem:[%s2] sm:$0xff] %v262
    %s308 = scalar_lea.vmem %s2, 8
    %309 = vst [vmem:[%s308] sm:$0xff] %v284
    %s310 = scalar_lea.vmem %s2, 16
    %311 = vst [vmem:[%s310] sm:$0xff] %v306
    // Predicated region
    $region14: #{mymodel_forward.1} parent=1 // pred_check
      _
    $region15: #{mymodel_forward.1} parent=1 // pred_check_branch
      %313 = sbr.rel (0) target = $region17
    $region16: #{mymodel_forward.1} parent=1 // pred_region
      _
    $region17: #{mymodel_forward.1} parent=1 // pred_fallthru
      _
    // Predicated region
    $region18: #{mymodel_forward.1} parent=1 // pred_check
      _
    $region19: #{mymodel_forward.1} parent=1 // pred_check_branch
      %315 = sbr.rel (0) target = $region21
    $region20: #{mymodel_forward.1} parent=1 // pred_region
      _
    $region21: #{mymodel_forward.1} parent=1 // pred_fallthru
      _
    %316 = vsyncpa [#allocation3], 1

</llo_original>
